<compile_context>
chip_gen: v6e
topology: v6e:2x2x1
jax: 0.10.0
libtpu: 0.0.40
codegen_flags: <defaults>
</compile_context>

<pallas_src>
import functools

import jax
import jax.numpy as jnp
from jax.experimental import pallas as pl
from jax.experimental.pallas import tpu as pltpu

EPS = 1e-5


def _apn_kernel(x_ref, s_ref, w_ref, b_ref, o_ref, *, c, unroll, fused_mm):
    # x_ref: (TB, C, N) input points     s_ref: (TB, S, N) style codes
    # w_ref: (2C, S) 1x1-conv weight     b_ref: (2C, 1) 1x1-conv bias
    tb, _, n = x_ref.shape
    inv_n = jnp.float32(1.0 / n)

    w = w_ref[...].astype(jnp.float32)          # (2C, S)
    b = b_ref[...].astype(jnp.float32)          # (2C, 1)
    if not fused_mm:
        # C not sublane-aligned: split the tiny (2C, S) weight once per grid
        # step so the big (.., N) matmul results never need an unaligned
        # sublane slice.
        wg, wb = w[:c], w[c:]
        bg, bb = b[:c], b[c:]

    # Loop over batch rows inside the block: one big pipelined DMA per grid
    # step while per-iteration f32 live ranges stay (C, N)-sized.
    @pl.loop(0, tb, unroll=unroll)
    def _(bi):
        x = x_ref[bi].astype(jnp.float32)        # (C, N)
        s = s_ref[bi].astype(jnp.float32)        # (S, N)

        # InstanceNorm1d: two-pass (centered) biased variance in f32.
        mean = jnp.sum(x, axis=-1, keepdims=True) * inv_n            # (C, 1)
        centered = x - mean
        var = jnp.sum(centered * centered, axis=-1, keepdims=True) * inv_n
        xn = centered * jax.lax.rsqrt(var + EPS)                     # (C, N)

        # 1x1 Conv1d == channel matmul on the MXU.
        if fused_mm:
            gb = jnp.dot(w, s, preferred_element_type=jnp.float32) + b  # (2C, N)
            gamma, beta = gb[:c], gb[c:]          # sublane-aligned (C % 8 == 0)
        else:
            gamma = jnp.dot(wg, s, preferred_element_type=jnp.float32) + bg
            beta = jnp.dot(wb, s, preferred_element_type=jnp.float32) + bb

        o_ref[bi] = (gamma * xn + beta).astype(o_ref.dtype)


def _tpu_hw_info():
    """(vmem_capacity_bytes, tensorcores_per_chip) with conservative fallbacks."""
    vmem_cap = 64 * 1024 * 1024          # v7x-safe default
    num_cores = 1
    try:
        info = pltpu.get_tpu_info()
        vmem_cap = int(info.vmem_capacity_bytes)
        for attr in ("num_cores", "num_tensorcores", "tensorcore_count", "core_count"):
            v = getattr(info, attr, None)
            if v:
                num_cores = max(num_cores, int(v))
                break
    except Exception:
        pass
    if num_cores <= 1:
        try:
            kind = jax.devices()[0].device_kind.lower()
            if any(t in kind for t in ("v7", "v5p", "v4")):
                num_cores = 2            # dual-TC / megacore parts
        except Exception:
            pass
    return vmem_cap, max(1, min(num_cores, 2))


def _iter_interm_bytes(C, S, N):
    # f32 intermediates live inside one loop iteration:
    # x, centered, xn, gamma+beta (or fused (2C, N)), result, style.
    return 4 * N * (6 * C + S)


def _unroll_for(tb, C, S, N):
    # Fully unroll only when the combined live set stays comfortably resident.
    return tb <= 4 and tb * _iter_interm_bytes(C, S, N) <= (1 << 20)


def _step_vmem_bytes(tb, C, S, N, x_item, s_item, w_item, unroll):
    # Pipelined I/O blocks (x in + out + style), double-buffered by Pallas.
    io = 2 * tb * N * (2 * C * x_item + S * s_item)
    # Grid-invariant params (single-buffered via pl.Buffered(1)) + slack.
    params = (2 * C * S + 2 * C) * w_item + 4096
    k = tb if unroll else 1
    return io + params + k * _iter_interm_bytes(C, S, N)


def adaptive_point_norm(x, style, weight, bias):
    """x: (B, C, N), style: (B, S, N), weight: (2C, S), bias: (2C,)."""
    B, C, N = x.shape
    _, S, _ = style.shape
    assert weight.shape == (2 * C, S) and bias.shape == (2 * C,)

    bias2 = bias.reshape(2 * C, 1)

    x_item = jnp.dtype(x.dtype).itemsize
    s_item = jnp.dtype(style.dtype).itemsize
    w_item = jnp.dtype(weight.dtype).itemsize

    vmem_cap, num_cores = _tpu_hw_info()

    # Grid-extent target: >= 2 steps per TensorCore so the double-buffered
    # DMA pipeline overlaps on every core; within that cap take the largest
    # divisor of B whose per-step footprint fits ~55% of VMEM.
    target_steps = 2 * num_cores
    budget = int(vmem_cap * 0.55)
    max_tb = max(1, B // min(B, target_steps))

    tb = 1
    for cand in range(max_tb, 0, -1):
        if B % cand == 0 and _step_vmem_bytes(
            cand, C, S, N, x_item, s_item, w_item, _unroll_for(cand, C, S, N)
        ) <= budget:
            tb = cand
            break
    unroll = _unroll_for(tb, C, S, N)
    step_bytes = _step_vmem_bytes(tb, C, S, N, x_item, s_item, w_item, unroll)

    # TODO(synk): if even tb=1 exceeds the budget (huge C*N on 64 MiB v7x),
    # add an N-tiled two-pass variant (stats pass over N tiles, then
    # normalize + style matmul per N tile) instead of only raising the limit.
    vmem_limit = int(
        min(vmem_cap * 0.9,
            max(step_bytes + (step_bytes >> 2) + (4 << 20), 24 << 20))
    )

    fused_mm = (C % 8 == 0)

    def _invariant_spec(shape):
        index_map = lambda i: (0,) * len(shape)
        try:
            # Grid-invariant params: single-buffered to save VMEM.
            return pl.BlockSpec(shape, index_map, pipeline_mode=pl.Buffered(1))
        except TypeError:  # older BlockSpec without pipeline_mode support
            return pl.BlockSpec(shape, index_map)

    kernel = functools.partial(_apn_kernel, c=C, unroll=unroll, fused_mm=fused_mm)

    grid = (B // tb,)
    return pl.pallas_call(
        kernel,
        out_shape=jax.ShapeDtypeStruct((B, C, N), x.dtype),
        grid_spec=pltpu.PrefetchScalarGridSpec(
            num_scalar_prefetch=0,
            grid=grid,
            in_specs=[
                pl.BlockSpec((tb, C, N), lambda i: (i, 0, 0)),
                pl.BlockSpec((tb, S, N), lambda i: (i, 0, 0)),
                _invariant_spec((2 * C, S)),
                _invariant_spec((2 * C, 1)),
            ],
            out_specs=pl.BlockSpec((tb, C, N), lambda i: (i, 0, 0)),
        ),
        compiler_params=pltpu.CompilerParams(
            dimension_semantics=("parallel",),
            vmem_limit_bytes=vmem_limit,
        ),
    )(x, style, weight, bias2)


def adaptive_point_norm_ref(x, style, weight, bias):
    """Pure-JAX reference mirroring the PyTorch module."""
    B, C, N = x.shape
    style_out = jnp.einsum("os,bsn->bon", weight, style) + bias[None, :, None]
    gamma, beta = style_out[:, :C, :], style_out[:, C:, :]
    mean = jnp.mean(x, axis=-1, keepdims=True)
    var = jnp.mean((x - mean) ** 2, axis=-1, keepdims=True)
    xn = (x - mean) / jnp.sqrt(var + EPS)
    return gamma * xn + beta


if __name__ == "__main__":
    # Small shapes consistent with the module's forward:
    #   input: (B, in_channel, N), style: (B, style_dim, N)
    B, C, S, N = 2, 4, 8, 16

    key = jax.random.PRNGKey(0)
    kx, ks, kw = jax.random.split(key, 3)
    x = jax.random.normal(kx, (B, C, N), dtype=jnp.float32)
    style = jax.random.normal(ks, (B, S, N), dtype=jnp.float32)

    # Deterministic parameter init matching __init__:
    #   weight ~ normal, bias[:C] = 1, bias[C:] = 0
    weight = jax.random.normal(kw, (2 * C, S), dtype=jnp.float32)
    bias = jnp.concatenate(
        [jnp.ones((C,), jnp.float32), jnp.zeros((C,), jnp.float32)]
    )

    out = jax.block_until_ready(adaptive_point_norm(x, style, weight, bias))
    ref = adaptive_point_norm_ref(x, style, weight, bias)

    assert out.shape == (B, C, N)
    assert jnp.allclose(out, ref, atol=1e-4, rtol=1e-4), "mismatch vs reference"
    print("KERNEL_OK")
</pallas_src>

<mosaic_0001>
module attributes {stable_mosaic.version = 11 : i64} {
  func.func @_apn_kernel(%arg0: i32, %arg1: memref<1x4x16xf32, #tpu.memory_space<vmem>>, %arg2: memref<1x8x16xf32, #tpu.memory_space<vmem>>, %arg3: memref<8x8xf32, #tpu.memory_space<vmem>>, %arg4: memref<8x1xf32, #tpu.memory_space<vmem>>, %arg5: memref<1x4x16xf32, #tpu.memory_space<vmem>>) attributes {dimension_semantics = [#tpu.dimension_semantics<parallel>], iteration_bounds = array<i64: 2>, scalar_prefetch = 0 : i64, scratch_operands = 0 : i64, tpu.core_type = #tpu.core_type<tc>, window_params = [{transform_indices = @transform_0, window_bounds = array<i64: 1, 4, 16>}, {transform_indices = @transform_1, window_bounds = array<i64: 1, 8, 16>}, {pipeline_mode = #tpu.pipeline_mode<synchronous>, transform_indices = @transform_2, window_bounds = array<i64: 8, 8>}, {pipeline_mode = #tpu.pipeline_mode<synchronous>, transform_indices = @transform_3, window_bounds = array<i64: 8, 1>}, {transform_indices = @transform_4, window_bounds = array<i64: 1, 4, 16>}]} {
    %c0 = arith.constant 0 : index
    %c0_0 = arith.constant 0 : index
    %0 = vector.load %arg3[%c0, %c0_0] : memref<8x8xf32, #tpu.memory_space<vmem>>, vector<8x8xf32>
    %c0_1 = arith.constant 0 : index
    %c0_2 = arith.constant 0 : index
    %1 = vector.load %arg4[%c0_1, %c0_2] : memref<8x1xf32, #tpu.memory_space<vmem>>, vector<8x1xf32>
    %2 = vector.extract_strided_slice %0 {offsets = [0, 0], sizes = [4, 8], strides = [1, 1]} : vector<8x8xf32> to vector<4x8xf32>
    %3 = vector.extract_strided_slice %0 {offsets = [4, 0], sizes = [4, 8], strides = [1, 1]} : vector<8x8xf32> to vector<4x8xf32>
    %4 = vector.extract_strided_slice %1 {offsets = [0, 0], sizes = [4, 1], strides = [1, 1]} : vector<8x1xf32> to vector<4x1xf32>
    %5 = vector.extract_strided_slice %1 {offsets = [4, 0], sizes = [4, 1], strides = [1, 1]} : vector<8x1xf32> to vector<4x1xf32>
    %cst = arith.constant 6.250000e-02 : f32
    %c0_i32 = arith.constant 0 : i32
    %c1_i32 = arith.constant 1 : i32
    %6 = arith.muli %c0_i32, %c1_i32 : i32
    %c0_i32_3 = arith.constant 0 : i32
    %7 = arith.addi %c0_i32_3, %6 : i32
    %8 = arith.index_cast %7 : i32 to index
    %c0_4 = arith.constant 0 : index
    %c0_5 = arith.constant 0 : index
    %9 = vector.load %arg1[%8, %c0_4, %c0_5] : memref<1x4x16xf32, #tpu.memory_space<vmem>>, vector<1x4x16xf32>
    %10 = vector.shape_cast %9 : vector<1x4x16xf32> to vector<4x16xf32>
    %11 = arith.index_cast %7 : i32 to index
    %c0_6 = arith.constant 0 : index
    %c0_7 = arith.constant 0 : index
    %12 = vector.load %arg2[%11, %c0_6, %c0_7] : memref<1x8x16xf32, #tpu.memory_space<vmem>>, vector<1x8x16xf32>
    %13 = vector.shape_cast %12 : vector<1x8x16xf32> to vector<8x16xf32>
    %cst_8 = arith.constant dense<0.000000e+00> : vector<4xf32>
    %14 = vector.multi_reduction <add>, %10, %cst_8 [1] : vector<4x16xf32> to vector<4xf32>
    %15 = vector.shape_cast %14 : vector<4xf32> to vector<4x1xf32>
    %16 = vector.broadcast %cst : f32 to vector<4x1xf32>
    %17 = arith.mulf %15, %16 : vector<4x1xf32>
    %18 = vector.broadcast %17 : vector<4x1xf32> to vector<4x16xf32>
    %19 = arith.subf %10, %18 : vector<4x16xf32>
    %20 = arith.mulf %19, %19 : vector<4x16xf32>
    %cst_9 = arith.constant dense<0.000000e+00> : vector<4xf32>
    %21 = vector.multi_reduction <add>, %20, %cst_9 [1] : vector<4x16xf32> to vector<4xf32>
    %22 = vector.shape_cast %21 : vector<4xf32> to vector<4x1xf32>
    %23 = vector.broadcast %cst : f32 to vector<4x1xf32>
    %24 = arith.mulf %22, %23 : vector<4x1xf32>
    %cst_10 = arith.constant 9.99999974E-6 : f32
    %25 = vector.broadcast %cst_10 : f32 to vector<4x1xf32>
    %26 = arith.addf %24, %25 : vector<4x1xf32>
    %27 = math.rsqrt %26 : vector<4x1xf32>
    %28 = vector.broadcast %27 : vector<4x1xf32> to vector<4x16xf32>
    %29 = arith.mulf %19, %28 : vector<4x16xf32>
    %cst_11 = arith.constant dense<0.000000e+00> : vector<4x16xf32>
    %30 = tpu.matmul %2, %13, %cst_11 {dimension_numbers = #tpu.dot_dimension_numbers<[1], [0], [0], [1], [0, 0, 1, 1], [], []>} : vector<4x8xf32>, vector<8x16xf32>, vector<4x16xf32> -> vector<4x16xf32>
    %31 = vector.broadcast %4 : vector<4x1xf32> to vector<4x16xf32>
    %32 = arith.addf %30, %31 : vector<4x16xf32>
    %cst_12 = arith.constant dense<0.000000e+00> : vector<4x16xf32>
    %33 = tpu.matmul %3, %13, %cst_12 {dimension_numbers = #tpu.dot_dimension_numbers<[1], [0], [0], [1], [0, 0, 1, 1], [], []>} : vector<4x8xf32>, vector<8x16xf32>, vector<4x16xf32> -> vector<4x16xf32>
    %34 = vector.broadcast %5 : vector<4x1xf32> to vector<4x16xf32>
    %35 = arith.addf %33, %34 : vector<4x16xf32>
    %36 = arith.mulf %32, %29 : vector<4x16xf32>
    %37 = arith.addf %36, %35 : vector<4x16xf32>
    %38 = arith.index_cast %7 : i32 to index
    %c0_13 = arith.constant 0 : index
    %c0_14 = arith.constant 0 : index
    %39 = vector.load %arg5[%38, %c0_13, %c0_14] : memref<1x4x16xf32, #tpu.memory_space<vmem>>, vector<1x4x16xf32>
    %40 = vector.shape_cast %39 : vector<1x4x16xf32> to vector<4x16xf32>
    %41 = vector.shape_cast %37 : vector<4x16xf32> to vector<1x4x16xf32>
    tpu.vector_store %arg5[%38, %c0_13, %c0_14], %41 {strides = array<i32>} : memref<1x4x16xf32, #tpu.memory_space<vmem>>, vector<1x4x16xf32>,
    %c1_i32_15 = arith.constant 1 : i32
    return
  }
  func.func @transform_0(%arg0: i32) -> (i32, i32, i32) {
    %c0_i32 = arith.constant 0 : i32
    %c0_i32_0 = arith.constant 0 : i32
    %c0_i32_1 = arith.constant 0 : i32
    return %arg0, %c0_i32, %c0_i32_0 : i32, i32, i32
  }
  func.func @transform_1(%arg0: i32) -> (i32, i32, i32) {
    %c0_i32 = arith.constant 0 : i32
    %c0_i32_0 = arith.constant 0 : i32
    %c0_i32_1 = arith.constant 0 : i32
    return %arg0, %c0_i32, %c0_i32_0 : i32, i32, i32
  }
  func.func @transform_2(%arg0: i32) -> (i32, i32) {
    %c0_i32 = arith.constant 0 : i32
    %c0_i32_0 = arith.constant 0 : i32
    %c0_i32_1 = arith.constant 0 : i32
    return %c0_i32, %c0_i32_0 : i32, i32
  }
  func.func @transform_3(%arg0: i32) -> (i32, i32) {
    %c0_i32 = arith.constant 0 : i32
    %c0_i32_0 = arith.constant 0 : i32
    %c0_i32_1 = arith.constant 0 : i32
    return %c0_i32, %c0_i32_0 : i32, i32
  }
  func.func @transform_4(%arg0: i32) -> (i32, i32, i32) {
    %c0_i32 = arith.constant 0 : i32
    %c0_i32_0 = arith.constant 0 : i32
    %c0_i32_1 = arith.constant 0 : i32
    return %arg0, %c0_i32, %c0_i32_0 : i32, i32, i32
  }
}

</mosaic_0001>

<llo_original>
// kernel: tpu_custom_call.1
$region0: #{tpu_custom_call.1}
  #allocation0 [shape = 'u32[]', space=smem, size = 0x4, offset = 0x4, fixed_abs, tag = 'smem constant byte address 0x4 - core index']
  #allocation1 [shape = 'u32[144,128]{1,0:T(1,128)}', space=vmem, size = 0x12000, scoped, tag = 'internal scratch']
  %s0 = inlined_call_operand.vmem [shape: f32[2,4,16], index: 0, kind: input, shape index: {}]
  %s1 = inlined_call_operand.hbm [shape: f32[2,8,16], index: 1, kind: input, shape index: {}]
  %s2 = inlined_call_operand.hbm [shape: f32[8,8], index: 2, kind: input, shape index: {}]
  %s3 = inlined_call_operand.vmem [shape: f32[8,1], index: 3, kind: input, shape index: {}]
  %s4 = inlined_call_operand.hbm [shape: f32[2,4,16], index: 4, kind: output, shape index: {}]
  %s5 = sld [smem:[#allocation0]]
  $region57: #{tpu_custom_call.1} parent=0
    _
  %s7 = ssub.s32 1, %s5
  %s8 = scalar_select 0, %s7, %s5
  $region1: #{tpu_custom_call.1} parent=0
    #allocation2 [shape = 'u8[8192]{0}', space=vmem, size = 0x2000, scoped, tag = 'input window, operand 1']
    #allocation3 [shape = 's32[2]{0}', space=sflag, size = 0x8, scoped, tag = 'scoped memory for tpu_custom_call.1']
    #allocation4 [shape = 's32[2]{0}', space=sflag, size = 0x8, scoped, tag = 'scoped memory for tpu_custom_call.1']
    #allocation5 [shape = 'u8[4096]{0}', space=vmem, size = 0x1000, scoped, tag = 'input window, operand 2, single buffered']
    #allocation6 [shape = 's32[1]{0}', space=sflag, size = 0x4, scoped, tag = 'scoped memory for tpu_custom_call.1']
    #allocation7 [shape = 'u8[4096]{0}', space=vmem, size = 0x1000, scoped, tag = 'output window, operand 0']
    %9 = vsyncpa [#allocation3], 0
    %s10 = scalar_lea.sflag [#allocation3], 1
    %11 = vsyncpa %s10, 0
    %12 = vsyncpa [#allocation6], 0
    %13 = vsyncpa [#allocation4], 0
    %s14 = scalar_lea.sflag [#allocation4], 1
    %15 = vsyncpa %s14, 0
    loop: start=0, step=1, limit=4
    $region2: #{tpu_custom_call.1} parent=1 // loop_pre_header
      _
    $region3: #{tpu_custom_call.1} parent=1 // loop_header
      %s17 = sphi 0, %s21
      %p18 = scmp.ge.s32.totalorder %s17, 4
      %s27 = sphi 0, %s29
      %s30 = sphi 0, %s27
      %s31 = sphi 0, %s30
      %s47 = sphi 0, %s31
      %s53 = sphi 0, %s55
      %s56 = sphi 0, %s53
      %s57 = sphi 0, %s56
      %s73 = sphi 0, %s57
      %s77 = sphi 0, %s77
      %s79 = sphi 0, %s77
      %s80 = sphi 0, %s79
      %s94 = sphi 0, %s80
      %s98 = sphi 0, %s98
      %s100 = sphi 0, %s98
      %s101 = sphi 0, %s100
      %s115 = sphi 0, %s101
      %s121 = sphi 0, %s123
      %s124 = sphi 0, %s121
      %s125 = sphi 0, %s124
      %s141 = sphi 0, %s125
    $region4: #{tpu_custom_call.1} parent=1 // loop_header_branch
      %20 = sbr.rel (%p18) target = $region8
    $region5: #{tpu_custom_call.1} parent=1 // loop_body
      %s22 = ssub.s32 %s17, 1
      %s23 = ssub.s32 %s17, 2
      %s24 = sadd.s32 %s17, 1
      %s25 = ssub.s32 %s17, %s24
      %p26 = scmp.eq.s32.totalorder %s25, 0
      %s28 = sadd.s32 %s27, 1
      %s29 = scalar_select %p26, %s27, %s28
      %p32 = pneg %p26
      %p33 = scmp.eq.s32.totalorder %s17, 1
      %p34 = por %p32, %p33
      %p35 = scmp.ne.s32.totalorder %s27, %s30
      %p36 = scmp.eq.s32.totalorder %s17, 0
      %p37 = por %p35, %p36
      %p38 = scmp.ne.s32.totalorder %s27, %s30
      %p39 = scmp.eq.s32.totalorder %s22, 1
      %p40 = por %p38, %p39
      %p41 = scmp.ne.s32.totalorder %s30, %s31
      %p42 = scmp.eq.s32.totalorder %s22, 0
      %p43 = por %p41, %p42
      %p44 = scmp.ne.s32.totalorder %s30, %s31
      %p45 = scmp.eq.s32.totalorder %s23, 1
      %p46 = por %p44, %p45
      %p48 = scmp.ne.s32.totalorder %s31, %s47
      %p49 = scmp.eq.s32.totalorder %s23, 0
      %p50 = por %p48, %p49
      %s51 = ssub.s32 %s17, %s24
      %p52 = scmp.eq.s32.totalorder %s51, 0
      %s54 = sadd.s32 %s53, 1
      %s55 = scalar_select %p52, %s53, %s54
      %p58 = pneg %p52
      %p59 = scmp.eq.s32.totalorder %s17, 1
      %p60 = por %p58, %p59
      %p61 = scmp.ne.s32.totalorder %s53, %s56
      %p62 = scmp.eq.s32.totalorder %s17, 0
      %p63 = por %p61, %p62
      %p64 = scmp.ne.s32.totalorder %s53, %s56
      %p65 = scmp.eq.s32.totalorder %s22, 1
      %p66 = por %p64, %p65
      %p67 = scmp.ne.s32.totalorder %s56, %s57
      %p68 = scmp.eq.s32.totalorder %s22, 0
      %p69 = por %p67, %p68
      %p70 = scmp.ne.s32.totalorder %s56, %s57
      %p71 = scmp.eq.s32.totalorder %s23, 1
      %p72 = por %p70, %p71
      %p74 = scmp.ne.s32.totalorder %s57, %s73
      %p75 = scmp.eq.s32.totalorder %s23, 0
      %p76 = por %p74, %p75
      %s78 = sadd.s32 %s77, 1
      %p81 = scmp.eq.s32.totalorder %s17, 1
      %p82 = scmp.ne.s32.totalorder %s77, %s79
      %p83 = scmp.eq.s32.totalorder %s17, 0
      %p84 = por %p82, %p83
      %p85 = scmp.ne.s32.totalorder %s77, %s79
      %p86 = scmp.eq.s32.totalorder %s22, 1
      %p87 = por %p85, %p86
      %p88 = scmp.ne.s32.totalorder %s79, %s80
      %p89 = scmp.eq.s32.totalorder %s22, 0
      %p90 = por %p88, %p89
      %p91 = scmp.ne.s32.totalorder %s79, %s80
      %p92 = scmp.eq.s32.totalorder %s23, 1
      %p93 = por %p91, %p92
      %p95 = scmp.ne.s32.totalorder %s80, %s94
      %p96 = scmp.eq.s32.totalorder %s23, 0
      %p97 = por %p95, %p96
      %s99 = sadd.s32 %s98, 1
      %p102 = scmp.eq.s32.totalorder %s17, 1
      %p103 = scmp.ne.s32.totalorder %s98, %s100
      %p104 = scmp.eq.s32.totalorder %s17, 0
      %p105 = por %p103, %p104
      %p106 = scmp.ne.s32.totalorder %s98, %s100
      %p107 = scmp.eq.s32.totalorder %s22, 1
      %p108 = por %p106, %p107
      %p109 = scmp.ne.s32.totalorder %s100, %s101
      %p110 = scmp.eq.s32.totalorder %s22, 0
      %p111 = por %p109, %p110
      %p112 = scmp.ne.s32.totalorder %s100, %s101
      %p113 = scmp.eq.s32.totalorder %s23, 1
      %p114 = por %p112, %p113
      %p116 = scmp.ne.s32.totalorder %s101, %s115
      %p117 = scmp.eq.s32.totalorder %s23, 0
      %p118 = por %p116, %p117
      %s119 = ssub.s32 %s17, %s24
      %p120 = scmp.eq.s32.totalorder %s119, 0
      %s122 = sadd.s32 %s121, 1
      %s123 = scalar_select %p120, %s121, %s122
      %p126 = pneg %p120
      %p127 = scmp.eq.s32.totalorder %s17, 1
      %p128 = por %p126, %p127
      %p129 = scmp.ne.s32.totalorder %s121, %s124
      %p130 = scmp.eq.s32.totalorder %s17, 0
      %p131 = por %p129, %p130
      %p132 = scmp.ne.s32.totalorder %s121, %s124
      %p133 = scmp.eq.s32.totalorder %s22, 1
      %p134 = por %p132, %p133
      %p135 = scmp.ne.s32.totalorder %s124, %s125
      %p136 = scmp.eq.s32.totalorder %s22, 0
      %p137 = por %p135, %p136
      %p138 = scmp.ne.s32.totalorder %s124, %s125
      %p139 = scmp.eq.s32.totalorder %s23, 1
      %p140 = por %p138, %p139
      %p142 = scmp.ne.s32.totalorder %s125, %s141
      %p143 = scmp.eq.s32.totalorder %s23, 0
      %p144 = por %p142, %p143
      %p145 = scmp.le.s32.totalorder 1, %s17
      %p146 = scmp.lt.s32.totalorder %s17, 3
      %p147 = pnand %p145, %p146
      %p148 = pneg %p147
      // Predicated region
      $region9: #{tpu_custom_call.1} parent=5 // pred_check
        _
      $region10: #{tpu_custom_call.1} parent=5 // pred_check_branch
        %150 = sbr.rel (%p147) target = $region12
      $region11: #{tpu_custom_call.1} parent=5 // pred_region
        %s151 = ssub.s32 %s17, 1
        // Predicated region
        $region13: #{tpu_custom_call.1} parent=11 // pred_check
          %p152 = pneg %p90
        $region14: #{tpu_custom_call.1} parent=11 // pred_check_branch
          %154 = sbr.rel (%p152) target = $region16
        $region15: #{tpu_custom_call.1} parent=11 // pred_region
          %s156 = ssub.s32 128, 128
          %157 = vsyncadd [#allocation6], %s156
          %s159 = sshll.u32 [#allocation5], 4
          %s160 = int_to_ptr.vmem [resolvable:$true] %s159
          %162 = dma.hbm_to_vmem [thread:$0]  %s2, 128, %s160, [#allocation6]
        $region16: #{tpu_custom_call.1} parent=11 // pred_fallthru
          _
        // Predicated region
        $region17: #{tpu_custom_call.1} parent=11 // pred_check
          %p163 = pneg %p111
        $region18: #{tpu_custom_call.1} parent=11 // pred_check_branch
          %165 = sbr.rel (%p163) target = $region20
        $region19: #{tpu_custom_call.1} parent=11 // pred_region
          _
        $region20: #{tpu_custom_call.1} parent=11 // pred_fallthru
          _
      $region12: #{tpu_custom_call.1} parent=5 // pred_fallthru
        _
      %p166 = scmp.lt.s32.totalorder %s17, 2
      // Predicated region
      $region21: #{tpu_custom_call.1} parent=5 // pred_check
        %p167 = pneg %p166
      $region22: #{tpu_custom_call.1} parent=5 // pred_check_branch
        %169 = sbr.rel (%p167) target = $region24
      $region23: #{tpu_custom_call.1} parent=5 // pred_region
        // Predicated region
        $region25: #{tpu_custom_call.1} parent=23 // pred_check
          %p170 = pneg %p37
        $region26: #{tpu_custom_call.1} parent=23 // pred_check_branch
          %172 = sbr.rel (%p170) target = $region28
        $region27: #{tpu_custom_call.1} parent=23 // pred_region
          %p173 = scmp.lt.s32.totalorder %s17, 1
          %s174 = scalar_select %p173, %s17, 1
          %s175 = smul.addr %s174, 4
          %s176 = scalar_lea.vmem %s0, %s175
        $region28: #{tpu_custom_call.1} parent=23 // pred_fallthru
          _
        // Predicated region
        $region29: #{tpu_custom_call.1} parent=23 // pred_check
          %p177 = pneg %p63
        $region30: #{tpu_custom_call.1} parent=23 // pred_check_branch
          %179 = sbr.rel (%p177) target = $region32
        $region31: #{tpu_custom_call.1} parent=23 // pred_region
          %s180 = sand.u32 %s53, 1
          %s181 = scalar_lea.sflag [#allocation3], %s180
          %s182 = sand.u32 %s53, 1
          %s183 = smul.addr %s182, 8
          %s184 = scalar_lea.vmem [#allocation2], %s183
          %s186 = ssub.s32 128, 128
          %187 = vsyncadd %s181, %s186
          %s188 = smul.addr %s17, 128
          %s189 = scalar_lea.hbm %s1, %s188
          %s191 = sshll.u32 %s184, 4
          %s192 = int_to_ptr.vmem [resolvable:$true] %s191
          %194 = dma.hbm_to_vmem [thread:$0]  %s189, 128, %s192, %s181
        $region32: #{tpu_custom_call.1} parent=23 // pred_fallthru
          _
      $region24: #{tpu_custom_call.1} parent=5 // pred_fallthru
        _
      %p195 = scmp.le.s32.totalorder 1, %s17
      %p196 = scmp.lt.s32.totalorder %s17, 3
      %p197 = pnand %p195, %p196
      %p198 = pneg %p197
      // Predicated region
      $region33: #{tpu_custom_call.1} parent=5 // pred_check
        _
      $region34: #{tpu_custom_call.1} parent=5 // pred_check_branch
        %200 = sbr.rel (%p197) target = $region36
      $region35: #{tpu_custom_call.1} parent=5 // pred_region
        %s201 = ssub.s32 %s17, 1
        %s202 = sand.u32 %s56, 1
        %s203 = scalar_lea.sflag [#allocation3], %s202
        %s204 = sand.u32 %s56, 1
        %s205 = smul.addr %s204, 8
        %s206 = scalar_lea.vmem [#allocation2], %s205
        // Predicated region
        $region37: #{tpu_custom_call.1} parent=35 // pred_check
          %p207 = pneg %p69
        $region38: #{tpu_custom_call.1} parent=35 // pred_check_branch
          %209 = sbr.rel (%p207) target = $region40
        $region39: #{tpu_custom_call.1} parent=35 // pred_region
          %210 = dma.done %s203, 128
        $region40: #{tpu_custom_call.1} parent=35 // pred_fallthru
          _
        // Predicated region
        $region41: #{tpu_custom_call.1} parent=35 // pred_check
          %p211 = pneg %p90
        $region42: #{tpu_custom_call.1} parent=35 // pred_check_branch
          %213 = sbr.rel (%p211) target = $region44
        $region43: #{tpu_custom_call.1} parent=35 // pred_region
          %214 = dma.done [#allocation6], 128
        $region44: #{tpu_custom_call.1} parent=35 // pred_fallthru
          _
        %p215 = scmp.lt.s32.totalorder %s22, 1
        %s216 = scalar_select %p215, %s22, 1
        %s217 = smul.addr %s216, 4
        %s218 = scalar_lea.vmem %s0, %s217
        %p219 = pneg %p43
        %p220 = pneg %p40
        %s221 = sand.u32 %s56, 1
        %s222 = scalar_lea.sflag [#allocation3], %s221
        %s223 = sand.u32 %s56, 1
        %s224 = smul.addr %s223, 8
        %s225 = scalar_lea.vmem [#allocation2], %s224
        %p226 = pneg %p69
        %p227 = pneg %p66
        %p228 = pneg %p90
        %p229 = pneg %p87
        %p230 = pneg %p111
        %p231 = pneg %p108
        %p232 = pneg %p137
        %p233 = pneg %p134
        %s234 = sand.u32 %s124, 1
        %s235 = scalar_lea.sflag [#allocation4], %s234
        %s236 = sand.u32 %s124, 1
        %s237 = smul.addr %s236, 4
        %s238 = scalar_lea.vmem [#allocation7], %s237
        %p239 = scmp.lt.s32.totalorder %s22, 1
        %s240 = scalar_select %p239, %s22, 1
        %s241 = smul.addr %s240, 4
        %s242 = scalar_lea.vmem %s0, %s241
        %v243 = vld [vmem:[#allocation5] sm:$0xff]
        %v244 = vld [vmem:[%s3] sm:$0xff]
        %v245 = vld [vmem:[%s242] sm:$0xf]
        %v246 = vld [vmem:[%s206] sm:$0xff]
        %vm247 = vcmask 125952
        %v248 = vsel %vm247, %v245, 0.0
        %249 = vadd.xlane.f32.xlu0 %v248
        %v250 = vpop.xlane.xlu0 %249
        %v251 = vmul.f32 %v250, 0.0625
        %v252 = vsub.f32 %v245, %v251
        %v253 = vmul.f32 %v252, %v252
        %v254 = vsel %vm247, %v253, 0.0
        %255 = vadd.xlane.f32.xlu0 %v254
        %v256 = vpop.xlane.xlu0 %255
        %v257 = vmul.f32 %v256, 0.0625
        %v258 = vadd.f32 %v257, 1e-05
        %v259 = vrsqrt.pop %v258
        %v260 = vmul.f32 %v252, %v259
        %262 = vset.pattern.permute.xlu0 0
        %263 = vperm.xlu0 %262, %v244
        %v264 = vpop.permute.xlu0 %263
        %vm266 = vcmask 64512
        %v268 = vsel %vm266, %v243, 0
        %270 = vmatprep.subr.mxu0 0.0
        %271 = vmatpush1.msra.mxu0 0.0
        %272 = vmatprep.subr.mxu0 0.0
        %273 = vmatpush1.msra.mxu0 0.0
        %274 = vmatprep.subr.mxu0 0.0
        %275 = vmatpush1.msra.mxu0 0.0
        %276 = vmatprep.subr.mxu0 0.0
        %277 = vmatpush1.msra.mxu0 0.0
        %278 = vmatprep.subr.mxu0 0.0
        %279 = vmatpush1.msra.mxu0 0.0
        %280 = vmatprep.subr.mxu0 0.0
        %281 = vmatpush1.msra.mxu0 0.0
        %282 = vmatprep.subr.mxu0 0.0
        %283 = vmatpush1.msra.mxu0 0.0
        %284 = vmatprep.subr.mxu0 0.0
        %285 = vmatpush1.msra.mxu0 0.0
        %286 = vmatprep.subr.mxu0 0.0
        %287 = vmatpush1.msra.mxu0 0.0
        %288 = vmatprep.subr.mxu0 0.0
        %289 = vmatpush1.msra.mxu0 0.0
        %290 = vmatprep.subr.mxu0 0.0
        %291 = vmatpush1.msra.mxu0 0.0
        %292 = vmatprep.subr.mxu0 0.0
        %293 = vmatpush1.msra.mxu0 0.0
        %294 = vmatprep.subr.mxu0 0.0
        %295 = vmatpush1.msra.mxu0 0.0
        %296 = vmatprep.subr.mxu0 0.0
        %297 = vmatpush1.msra.mxu0 0.0
        %298 = vmatprep.subr.mxu0 0.0
        %299 = vmatpush1.msra.mxu0 0.0
        %300 = vmatprep.subr.mxu0 0.0
        %301 = vmatpush1.msra.mxu0 %v246
        %302 = vmatprep.subr.mxu0 0.0
        %303 = vmatpush2.msra.mxu0 0.0
        %304 = vmatprep.subr.mxu0 0.0
        %305 = vmatpush2.msra.mxu0 0.0
        %306 = vmatprep.subr.mxu0 0.0
        %307 = vmatpush2.msra.mxu0 0.0
        %308 = vmatprep.subr.mxu0 0.0
        %309 = vmatpush2.msra.mxu0 0.0
        %310 = vmatprep.subr.mxu0 0.0
        %311 = vmatpush2.msra.mxu0 0.0
        %312 = vmatprep.subr.mxu0 0.0
        %313 = vmatpush2.msra.mxu0 0.0
        %314 = vmatprep.subr.mxu0 0.0
        %315 = vmatpush2.msra.mxu0 0.0
        %316 = vmatprep.subr.mxu0 0.0
        %317 = vmatpush2.msra.mxu0 0.0
        %318 = vmatprep.subr.mxu0 0.0
        %319 = vmatpush2.msra.mxu0 0.0
        %320 = vmatprep.subr.mxu0 0.0
        %321 = vmatpush2.msra.mxu0 0.0
        %322 = vmatprep.subr.mxu0 0.0
        %323 = vmatpush2.msra.mxu0 0.0
        %324 = vmatprep.subr.mxu0 0.0
        %325 = vmatpush2.msra.mxu0 0.0
        %326 = vmatprep.subr.mxu0 0.0
        %327 = vmatpush2.msra.mxu0 0.0
        %328 = vmatprep.subr.mxu0 0.0
        %329 = vmatpush2.msra.mxu0 0.0
        %330 = vmatprep.subr.mxu0 0.0
        %331 = vmatpush2.msra.mxu0 0.0
        %332 = vmatprep.subr.mxu0 0.0
        %333 = vmatpush2.msra.mxu0 0.0
        %334 = vmatprep.mubr.f32.mxu0 0.0
        %335 = vmatmul.mubr.f32.gmra.mxu0 %v268
        %v336 = vpop.f32.mrf.mxu0
        %v337 = vadd.f32 %v264, %v336
        %v338 = vpop.f32.mrf.mxu0
        %339 = vdwg.mxu0
        %v340 = vrot.slane %v243, 4
        %v341 = vrot.slane %v264, 4
        %v343 = vsel %vm266, %v340, 0
        %345 = vmatprep.subr.mxu0 0.0
        %346 = vmatpush1.msra.mxu0 0.0
        %347 = vmatprep.subr.mxu0 0.0
        %348 = vmatpush1.msra.mxu0 0.0
        %349 = vmatprep.subr.mxu0 0.0
        %350 = vmatpush1.msra.mxu0 0.0
        %351 = vmatprep.subr.mxu0 0.0
        %352 = vmatpush1.msra.mxu0 0.0
        %353 = vmatprep.subr.mxu0 0.0
        %354 = vmatpush1.msra.mxu0 0.0
        %355 = vmatprep.subr.mxu0 0.0
        %356 = vmatpush1.msra.mxu0 0.0
        %357 = vmatprep.subr.mxu0 0.0
        %358 = vmatpush1.msra.mxu0 0.0
        %359 = vmatprep.subr.mxu0 0.0
        %360 = vmatpush1.msra.mxu0 0.0
        %361 = vmatprep.subr.mxu0 0.0
        %362 = vmatpush1.msra.mxu0 0.0
        %363 = vmatprep.subr.mxu0 0.0
        %364 = vmatpush1.msra.mxu0 0.0
        %365 = vmatprep.subr.mxu0 0.0
        %366 = vmatpush1.msra.mxu0 0.0
        %367 = vmatprep.subr.mxu0 0.0
        %368 = vmatpush1.msra.mxu0 0.0
        %369 = vmatprep.subr.mxu0 0.0
        %370 = vmatpush1.msra.mxu0 0.0
        %371 = vmatprep.subr.mxu0 0.0
        %372 = vmatpush1.msra.mxu0 0.0
        %373 = vmatprep.subr.mxu0 0.0
        %374 = vmatpush1.msra.mxu0 0.0
        %375 = vmatprep.subr.mxu0 0.0
        %376 = vmatpush1.msra.mxu0 %v246
        %377 = vmatprep.subr.mxu0 0.0
        %378 = vmatpush2.msra.mxu0 0.0
        %379 = vmatprep.subr.mxu0 0.0
        %380 = vmatpush2.msra.mxu0 0.0
        %381 = vmatprep.subr.mxu0 0.0
        %382 = vmatpush2.msra.mxu0 0.0
        %383 = vmatprep.subr.mxu0 0.0
        %384 = vmatpush2.msra.mxu0 0.0
        %385 = vmatprep.subr.mxu0 0.0
        %386 = vmatpush2.msra.mxu0 0.0
        %387 = vmatprep.subr.mxu0 0.0
        %388 = vmatpush2.msra.mxu0 0.0
        %389 = vmatprep.subr.mxu0 0.0
        %390 = vmatpush2.msra.mxu0 0.0
        %391 = vmatprep.subr.mxu0 0.0
        %392 = vmatpush2.msra.mxu0 0.0
        %393 = vmatprep.subr.mxu0 0.0
        %394 = vmatpush2.msra.mxu0 0.0
        %395 = vmatprep.subr.mxu0 0.0
        %396 = vmatpush2.msra.mxu0 0.0
        %397 = vmatprep.subr.mxu0 0.0
        %398 = vmatpush2.msra.mxu0 0.0
        %399 = vmatprep.subr.mxu0 0.0
        %400 = vmatpush2.msra.mxu0 0.0
        %401 = vmatprep.subr.mxu0 0.0
        %402 = vmatpush2.msra.mxu0 0.0
        %403 = vmatprep.subr.mxu0 0.0
        %404 = vmatpush2.msra.mxu0 0.0
        %405 = vmatprep.subr.mxu0 0.0
        %406 = vmatpush2.msra.mxu0 0.0
        %407 = vmatprep.subr.mxu0 0.0
        %408 = vmatpush2.msra.mxu0 0.0
        %409 = vmatprep.mubr.f32.mxu0 0.0
        %410 = vmatmul.mubr.f32.gmra.mxu0 %v343
        %v411 = vpop.f32.mrf.mxu0
        %v412 = vadd.f32 %v341, %v411
        %v413 = vpop.f32.mrf.mxu0
        %414 = vdwg.mxu0
        %v415 = vmul.f32 %v337, %v260
        %v416 = vadd.f32 %v415, %v412
        %417 = vst.msk [vmem:[%s238] sm:$0xf] %vm247, %v416
        %s418 = sand.u32 %s124, 1
        %s419 = scalar_lea.sflag [#allocation4], %s418
        %s420 = sand.u32 %s124, 1
        %s421 = smul.addr %s420, 4
        %s422 = scalar_lea.vmem [#allocation7], %s421
        // Predicated region
        $region45: #{tpu_custom_call.1} parent=35 // pred_check
          %p423 = pneg %p134
        $region46: #{tpu_custom_call.1} parent=35 // pred_check_branch
          %425 = sbr.rel (%p423) target = $region48
        $region47: #{tpu_custom_call.1} parent=35 // pred_region
          %s427 = ssub.s32 64, 64
          %428 = vsyncadd %s419, %s427
          %s429 = smul.addr %s22, 64
          %s430 = scalar_lea.hbm %s4, %s429
          %s432 = sshll.u32 %s422, 4
          %s433 = int_to_ptr.vmem [resolvable:$true] %s432
          %435 = dma.vmem_to_hbm [thread:$0]  %s433, 64, %s430, %s419
        $region48: #{tpu_custom_call.1} parent=35 // pred_fallthru
          _
      $region36: #{tpu_custom_call.1} parent=5 // pred_fallthru
        _
      %p436 = scmp.le.s32.totalorder 2, %s17
      // Predicated region
      $region49: #{tpu_custom_call.1} parent=5 // pred_check
        %p437 = pneg %p436
      $region50: #{tpu_custom_call.1} parent=5 // pred_check_branch
        %439 = sbr.rel (%p437) target = $region52
      $region51: #{tpu_custom_call.1} parent=5 // pred_region
        %s440 = ssub.s32 %s17, 2
        // Predicated region
        $region53: #{tpu_custom_call.1} parent=51 // pred_check
          %p441 = pneg %p140
        $region54: #{tpu_custom_call.1} parent=51 // pred_check_branch
          %443 = sbr.rel (%p441) target = $region56
        $region55: #{tpu_custom_call.1} parent=51 // pred_region
          %s444 = sand.u32 %s125, 1
          %s445 = scalar_lea.sflag [#allocation4], %s444
          %s446 = sand.u32 %s125, 1
          %s447 = smul.addr %s446, 4
          %s448 = scalar_lea.vmem [#allocation7], %s447
          %449 = dma.done %s445, 64
        $region56: #{tpu_custom_call.1} parent=51 // pred_fallthru
          _
      $region52: #{tpu_custom_call.1} parent=5 // pred_fallthru
        _
    $region6: #{tpu_custom_call.1} parent=1 // loop_footer
      %s21 = sadd.s32 1, %s17
    $region7: #{tpu_custom_call.1} parent=1 // loop_footer_branch
      %16 = sbr.rel target = $region3
    $region8: #{tpu_custom_call.1} parent=1 // loop_exit
      _
    %450 = vsyncpa [#allocation3], 1
    %s451 = scalar_lea.sflag [#allocation3], 1
    %452 = vsyncpa %s451, 1
    %453 = vsyncpa [#allocation6], 1
    %454 = vsyncpa [#allocation4], 1
    %s455 = scalar_lea.sflag [#allocation4], 1
    %456 = vsyncpa %s455, 1

</llo_original>
